<compile_context>
chip_gen: v5e
topology: v5e:2x2
jax: 0.10.0
libtpu: 0.0.40
codegen_flags: <defaults>
</compile_context>

<pallas_src>
import functools

import jax
import jax.numpy as jnp
from jax.experimental import pallas as pl
from jax.experimental.pallas import tpu as pltpu

_LANE = 128
_VMEM_TARGET_BYTES = 24 << 20   # per-step working-set target (inputs x2 bufs + f32 temps)
_VMEM_LIMIT_FLOOR = 32 << 20    # >= scoped-VMEM defaults on all generations
_VMEM_LIMIT_CAP = 48 << 20      # leaves headroom under v7x's 64 MiB physical VMEM


def _round_up(x: int, m: int) -> int:
    return ((x + m - 1) // m) * m


def _pick_tile_rows(c: int, in_itemsizes, f32_temps: int, sub: int) -> int:
    """Byte-capped row tile: accounts for lane padding and f32 body temps."""
    c_pad = _round_up(c, _LANE)
    # 2 pipeline buffers per streamed input (lane-padded) + f32 intermediates
    # (x_f32, exp(x-m), t*exp) that Mosaic materializes as internal scratch.
    per_row = c_pad * (2 * sum(in_itemsizes) + f32_temps * 4)
    rows = _VMEM_TARGET_BYTES // max(per_row, 1)
    return max(sub, (rows // sub) * sub)


def _vmem_limit(tn: int, c: int, in_itemsizes, f32_temps: int) -> int:
    """Scoped-VMEM request covering double-buffered inputs + f32 temps + margin."""
    c_pad = _round_up(c, _LANE)
    tn_pad = _round_up(tn, 8)
    est = tn_pad * c_pad * (2 * sum(in_itemsizes) + f32_temps * 4) + (1 << 20)
    est = est + est // 4
    return int(min(max(est, _VMEM_LIMIT_FLOOR), _VMEM_LIMIT_CAP))


def _finish_rows(num, denom, q: float, row, n: int):
    """pred_y -> clamp -> (1 - pred_y^q)/q, with padded rows masked to zero."""
    pred_y = jnp.maximum(num / denom, 0.0001)          # torch.clamp(min=0.0001)
    per_sample = (1.0 - jnp.power(pred_y, q)) / q       # (tn, 1)
    # select() also stops NaN/Inf from garbage-padded edge rows propagating.
    return jnp.where(row < n, per_sample, 0.0)


def _gce_dense_kernel(logits_ref, tgt_ref, part_ref, *, q: float, n: int, tn: int):
    """Dense (soft-label) tile: row softmax stats + masked partial sum."""
    i = pl.program_id(0)
    x = logits_ref[...].astype(jnp.float32)              # (tn, C)
    t = tgt_ref[...].astype(jnp.float32)                 # (tn, C)

    m = jnp.max(x, axis=1, keepdims=True)                # (tn, 1)
    e = jnp.exp(x - m)                                   # (tn, C)
    denom = jnp.sum(e, axis=1, keepdims=True)            # (tn, 1)
    num = jnp.sum(t * e, axis=1, keepdims=True)          # (tn, 1)

    row = i * tn + jax.lax.broadcasted_iota(jnp.int32, (tn, 1), 0)
    per_sample = _finish_rows(num, denom, q, row, n)

    # Lane-dense (1, 8, 128) slab per tile -> unmasked stores, independent
    # ("parallel") grid axis.
    part_ref[...] = jnp.full(part_ref.shape, jnp.sum(per_sample), dtype=part_ref.dtype)


def _gce_label_kernel(logits_ref, lbl_ref, part_ref, *, q: float, n: int, tn: int, c: int):
    """One-hot fast path: only logits streamed; label column selected via iota."""
    i = pl.program_id(0)
    x = logits_ref[...].astype(jnp.float32)              # (tn, C)
    lbl = lbl_ref[...].astype(jnp.int32)                 # (tn, 1)

    m = jnp.max(x, axis=1, keepdims=True)
    e = jnp.exp(x - m)
    denom = jnp.sum(e, axis=1, keepdims=True)
    col = jax.lax.broadcasted_iota(jnp.int32, (tn, c), 1)
    num = jnp.sum(jnp.where(col == lbl, e, 0.0), axis=1, keepdims=True)

    row = i * tn + jax.lax.broadcasted_iota(jnp.int32, (tn, 1), 0)
    per_sample = _finish_rows(num, denom, q, row, n)

    part_ref[...] = jnp.full(part_ref.shape, jnp.sum(per_sample), dtype=part_ref.dtype)


def _run_gce(kernel, arrays, in_specs, n: int, tn: int, vmem_limit: int) -> jax.Array:
    num_tiles = pl.cdiv(n, tn)
    partials = pl.pallas_call(
        kernel,
        out_shape=jax.ShapeDtypeStruct((num_tiles, 8, 128), jnp.float32),
        grid_spec=pltpu.PrefetchScalarGridSpec(
            num_scalar_prefetch=0,
            grid=(num_tiles,),
            in_specs=in_specs,
            out_specs=pl.BlockSpec((1, 8, 128), lambda i: (i, 0, 0)),
        ),
        compiler_params=pltpu.CompilerParams(
            # Batch tiles are fully independent -> megacore-shardable on v7x.
            dimension_semantics=("parallel",),
            vmem_limit_bytes=vmem_limit,
        ),
    )(*arrays)
    # Tiny finalization in plain JAX: one scalar per tile, divide by true N.
    return jnp.sum(partials[:, 0, 0]) / jnp.float32(n)


def gce_loss(outputs: jax.Array, targets: jax.Array, q: float,
             *, tile_rows: int | None = None) -> jax.Array:
    """Dense-targets GCE loss. outputs, targets: [N, C] -> scalar float32."""
    n, c = outputs.shape
    assert targets.shape == (n, c)

    iso = jnp.dtype(outputs.dtype).itemsize
    ist = jnp.dtype(targets.dtype).itemsize
    # Sublane multiple by dtype packing: f32 -> 8, bf16 -> 16, int8/fp8 -> 32.
    sub = max(8, 32 // min(iso, ist))

    if tile_rows is None:
        tile_rows = _pick_tile_rows(c, (iso, ist), f32_temps=3, sub=sub)
    max_tn = _round_up(tile_rows, sub)
    tn = n if n <= max_tn else max_tn           # full-extent block is always legal

    vmem_limit = _vmem_limit(tn, c, (iso, ist), f32_temps=3)
    kernel = functools.partial(_gce_dense_kernel, q=float(q), n=n, tn=tn)
    in_specs = [
        pl.BlockSpec((tn, c), lambda i: (i, 0)),
        pl.BlockSpec((tn, c), lambda i: (i, 0)),
    ]
    return _run_gce(kernel, (outputs, targets), in_specs, n, tn, vmem_limit)


def gce_loss_from_labels(outputs: jax.Array, labels: jax.Array, q: float,
                         *, tile_rows: int | None = None) -> jax.Array:
    """One-hot fast path: outputs [N, C], integer labels [N] -> scalar float32.

    Equivalent to gce_loss(outputs, one_hot(labels, C), q) but halves HBM bytes
    by never streaming the dense targets array.
    """
    n, c = outputs.shape
    assert labels.shape == (n,)

    iso = jnp.dtype(outputs.dtype).itemsize
    sub = max(8, 32 // iso)

    if tile_rows is None:
        tile_rows = _pick_tile_rows(c, (iso,), f32_temps=3, sub=sub)
    max_tn = _round_up(tile_rows, sub)
    tn = n if n <= max_tn else max_tn

    vmem_limit = _vmem_limit(tn, c, (iso,), f32_temps=3)
    labels2d = labels.astype(jnp.int32).reshape(n, 1)
    kernel = functools.partial(_gce_label_kernel, q=float(q), n=n, tn=tn, c=c)
    in_specs = [
        pl.BlockSpec((tn, c), lambda i: (i, 0)),
        pl.BlockSpec((tn, 1), lambda i: (i, 0)),   # last dim == full array dim (legal)
    ]
    return _run_gce(kernel, (outputs, labels2d), in_specs, n, tn, vmem_limit)


def gce_loss_ref(outputs, targets, q):
    # Pure-JAX reference (mirrors the PyTorch module) for correctness check.
    pred = jax.nn.softmax(outputs.astype(jnp.float32), axis=1)
    pred_y = jnp.sum(targets.astype(jnp.float32) * pred, axis=1)
    pred_y = jnp.maximum(pred_y, 0.0001)
    return jnp.mean((1.0 - pred_y ** q) / q, axis=0)


if __name__ == "__main__":
    # args.beta — deterministic, in-script.
    beta = 0.7

    key = jax.random.PRNGKey(0)
    k_logits, k_labels, k_logits2, k_tgt2, k_logits3, k_labels3 = jax.random.split(key, 6)

    # 1) Dense path, single tile (batch x classes).
    batch, num_classes = 8, 16
    outputs = jax.random.normal(k_logits, (batch, num_classes), dtype=jnp.float32)
    labels = jax.random.randint(k_labels, (batch,), 0, num_classes)
    targets = jax.nn.one_hot(labels, num_classes, dtype=jnp.float32)

    loss = jax.block_until_ready(gce_loss(outputs, targets, beta))
    ref = jax.block_until_ready(gce_loss_ref(outputs, targets, beta))
    assert jnp.allclose(loss, ref, rtol=1e-5, atol=1e-6), (loss, ref)

    # 2) Dense path, multi-tile + ragged edge tile with soft labels.
    batch2 = 50
    outputs2 = jax.random.normal(k_logits2, (batch2, num_classes), dtype=jnp.float32)
    targets2 = jax.nn.softmax(
        jax.random.normal(k_tgt2, (batch2, num_classes), dtype=jnp.float32), axis=1
    )
    loss2 = jax.block_until_ready(gce_loss(outputs2, targets2, beta, tile_rows=16))
    ref2 = jax.block_until_ready(gce_loss_ref(outputs2, targets2, beta))
    assert jnp.allclose(loss2, ref2, rtol=1e-5, atol=1e-6), (loss2, ref2)

    # 3) One-hot fast path (integer labels), multi-tile + ragged edge tile.
    batch3 = 50
    outputs3 = jax.random.normal(k_logits3, (batch3, num_classes), dtype=jnp.float32)
    labels3 = jax.random.randint(k_labels3, (batch3,), 0, num_classes)
    targets3 = jax.nn.one_hot(labels3, num_classes, dtype=jnp.float32)
    loss3 = jax.block_until_ready(gce_loss_from_labels(outputs3, labels3, beta, tile_rows=16))
    ref3 = jax.block_until_ready(gce_loss_ref(outputs3, targets3, beta))
    assert jnp.allclose(loss3, ref3, rtol=1e-5, atol=1e-6), (loss3, ref3)

    print("KERNEL_OK")
</pallas_src>

<mosaic_0001>
module attributes {stable_mosaic.version = 11 : i64} {
  func.func @_gce_dense_kernel(%arg0: i32, %arg1: memref<8x16xf32, #tpu.memory_space<vmem>>, %arg2: memref<8x16xf32, #tpu.memory_space<vmem>>, %arg3: memref<1x8x128xf32, #tpu.memory_space<vmem>>) attributes {dimension_semantics = [#tpu.dimension_semantics<parallel>], iteration_bounds = array<i64: 1>, scalar_prefetch = 0 : i64, scratch_operands = 0 : i64, tpu.core_type = #tpu.core_type<tc>, window_params = [{transform_indices = @transform_0, window_bounds = array<i64: 8, 16>}, {transform_indices = @transform_1, window_bounds = array<i64: 8, 16>}, {transform_indices = @transform_2, window_bounds = array<i64: 1, 8, 128>}]} {
    %c0 = arith.constant 0 : index
    %c0_0 = arith.constant 0 : index
    %0 = vector.load %arg1[%c0, %c0_0] : memref<8x16xf32, #tpu.memory_space<vmem>>, vector<8x16xf32>
    %c0_1 = arith.constant 0 : index
    %c0_2 = arith.constant 0 : index
    %1 = vector.load %arg2[%c0_1, %c0_2] : memref<8x16xf32, #tpu.memory_space<vmem>>, vector<8x16xf32>
    %cst = arith.constant dense<0xFF800000> : vector<8xf32>
    %2 = vector.multi_reduction <maximumf>, %0, %cst [1] : vector<8x16xf32> to vector<8xf32>
    %3 = vector.shape_cast %2 : vector<8xf32> to vector<8x1xf32>
    %4 = vector.broadcast %3 : vector<8x1xf32> to vector<8x16xf32>
    %5 = arith.subf %0, %4 : vector<8x16xf32>
    %6 = math.exp %5 : vector<8x16xf32>
    %cst_3 = arith.constant dense<0.000000e+00> : vector<8xf32>
    %7 = vector.multi_reduction <add>, %6, %cst_3 [1] : vector<8x16xf32> to vector<8xf32>
    %8 = vector.shape_cast %7 : vector<8xf32> to vector<8x1xf32>
    %9 = arith.mulf %1, %6 : vector<8x16xf32>
    %cst_4 = arith.constant dense<0.000000e+00> : vector<8xf32>
    %10 = vector.multi_reduction <add>, %9, %cst_4 [1] : vector<8x16xf32> to vector<8xf32>
    %11 = vector.shape_cast %10 : vector<8xf32> to vector<8x1xf32>
    %c8_i32 = arith.constant 8 : i32
    %12 = arith.muli %arg0, %c8_i32 : i32
    %13 = tpu.iota {dimensions = array<i32: 0>} : vector<8x1xi32>
    %14 = vector.broadcast %12 : i32 to vector<8x1xi32>
    %15 = arith.addi %14, %13 : vector<8x1xi32>
    %16 = arith.divf %11, %8 : vector<8x1xf32>
    %cst_5 = arith.constant 9.99999974E-5 : f32
    %17 = vector.broadcast %cst_5 : f32 to vector<8x1xf32>
    %18 = arith.maximumf %16, %17 : vector<8x1xf32>
    %cst_6 = arith.constant 0.699999988 : f32
    %19 = vector.broadcast %cst_6 : f32 to vector<8x1xf32>
    %20 = math.powf %18, %19 : vector<8x1xf32>
    %cst_7 = arith.constant 1.000000e+00 : f32
    %21 = vector.broadcast %cst_7 : f32 to vector<8x1xf32>
    %22 = arith.subf %21, %20 : vector<8x1xf32>
    %cst_8 = arith.constant 0.699999988 : f32
    %23 = vector.broadcast %cst_8 : f32 to vector<8x1xf32>
    %24 = arith.divf %22, %23 : vector<8x1xf32>
    %c8_i32_9 = arith.constant 8 : i32
    %25 = vector.broadcast %c8_i32_9 : i32 to vector<8x1xi32>
    %26 = arith.cmpi slt, %15, %25 : vector<8x1xi32>
    %cst_10 = arith.constant 0.000000e+00 : f32
    %27 = vector.broadcast %cst_10 : f32 to vector<8x1xf32>
    %28 = arith.select %26, %24, %27 : vector<8x1xi1>, vector<8x1xf32>
    %29 = vector.shape_cast %28 : vector<8x1xf32> to vector<1x8x1xf32>
    %cst_11 = arith.constant dense<0.000000e+00> : vector<1xf32>
    %30 = vector.multi_reduction <add>, %29, %cst_11 [1, 2] : vector<1x8x1xf32> to vector<1xf32>
    %31 = vector.shape_cast %30 : vector<1xf32> to vector<1x1x1xf32>
    %32 = vector.extract %31[0, 0, 0] : f32 from vector<1x1x1xf32>
    %33 = vector.broadcast %32 : f32 to vector<1x8x128xf32>
    %c0_12 = arith.constant 0 : index
    %c0_13 = arith.constant 0 : index
    %c0_14 = arith.constant 0 : index
    %34 = vector.load %arg3[%c0_12, %c0_13, %c0_14] : memref<1x8x128xf32, #tpu.memory_space<vmem>>, vector<1x8x128xf32>
    tpu.vector_store %arg3[%c0_12, %c0_13, %c0_14], %33 {strides = array<i32>} : memref<1x8x128xf32, #tpu.memory_space<vmem>>, vector<1x8x128xf32>,
    return
  }
  func.func @transform_0(%arg0: i32) -> (i32, i32) {
    %c0_i32 = arith.constant 0 : i32
    %c0_i32_0 = arith.constant 0 : i32
    return %arg0, %c0_i32 : i32, i32
  }
  func.func @transform_1(%arg0: i32) -> (i32, i32) {
    %c0_i32 = arith.constant 0 : i32
    %c0_i32_0 = arith.constant 0 : i32
    return %arg0, %c0_i32 : i32, i32
  }
  func.func @transform_2(%arg0: i32) -> (i32, i32, i32) {
    %c0_i32 = arith.constant 0 : i32
    %c0_i32_0 = arith.constant 0 : i32
    %c0_i32_1 = arith.constant 0 : i32
    return %arg0, %c0_i32, %c0_i32_0 : i32, i32, i32
  }
}

</mosaic_0001>

<llo_original>
// kernel: tpu_custom_call.1
$region0: #{tpu_custom_call.1}
  #allocation0 [shape = 'u32[]', space=smem, size = 0x4, offset = 0x4, fixed_abs, tag = 'smem constant byte address 0x4 - core index']
  #allocation1 [shape = 'u32[72,128]{1,0:T(1,128)}', space=vmem, size = 0x9000, scoped, tag = 'internal scratch']
  %s0 = inlined_call_operand.hbm [shape: f32[8,16], index: 0, kind: input, shape index: {}]
  %s1 = inlined_call_operand.hbm [shape: f32[8,16], index: 1, kind: input, shape index: {}]
  %s2 = inlined_call_operand.hbm [shape: f32[1,8,128], index: 2, kind: output, shape index: {}]
  %s3 = sld [smem:[#allocation0]]
  $region26: #{tpu_custom_call.1} parent=0
    _
  %s5 = ssub.s32 1, %s3
  %s6 = scalar_select 0, %s5, %s3
  $region1: #{tpu_custom_call.1} parent=0
    #allocation2 [shape = 'u8[4096]{0}', space=vmem, size = 0x1000, scoped, tag = 'input window, operand 0, single buffered']
    #allocation3 [shape = 's32[1]{0}', space=sflag, size = 0x4, scoped, tag = 'scoped memory for tpu_custom_call.1']
    #allocation4 [shape = 's32[1]{0}', space=sflag, size = 0x4, scoped, tag = 'scoped memory for tpu_custom_call.1']
    #allocation5 [shape = 'u8[4096]{0}', space=vmem, size = 0x1000, scoped, tag = 'input window, operand 1, single buffered']
    #allocation6 [shape = 's32[1]{0}', space=sflag, size = 0x4, scoped, tag = 'scoped memory for tpu_custom_call.1']
    #allocation7 [shape = 'u8[4096]{0}', space=vmem, size = 0x1000, scoped, tag = 'output window, operand 0, single buffered']
    %7 = vsyncpa [#allocation3], 0
    %8 = vsyncpa [#allocation6], 0
    %9 = vsyncpa [#allocation4], 0
    // Predicated region
    $region2: #{tpu_custom_call.1} parent=1 // pred_check
      _
    $region3: #{tpu_custom_call.1} parent=1 // pred_check_branch
      %11 = sbr.rel (0) target = $region5
    $region4: #{tpu_custom_call.1} parent=1 // pred_region
      %13 = vsyncadd [#allocation3], 0
      %s15 = sshll.u32 %s0, 4
      %s16 = int_to_ptr.hbm [resolvable:$true] %s15
      %s17 = sshll.u32 [#allocation2], 4
      %s18 = int_to_ptr.vmem [resolvable:$true] %s17
      %20 = dma.hbm_to_vmem [thread:$0]  %s16, 128, %s18, [#allocation3]
    $region5: #{tpu_custom_call.1} parent=1 // pred_fallthru
      _
    // Predicated region
    $region6: #{tpu_custom_call.1} parent=1 // pred_check
      _
    $region7: #{tpu_custom_call.1} parent=1 // pred_check_branch
      %22 = sbr.rel (0) target = $region9
    $region8: #{tpu_custom_call.1} parent=1 // pred_region
      %24 = vsyncadd [#allocation6], 0
      %s26 = sshll.u32 %s1, 4
      %s27 = int_to_ptr.hbm [resolvable:$true] %s26
      %s28 = sshll.u32 [#allocation5], 4
      %s29 = int_to_ptr.vmem [resolvable:$true] %s28
      %31 = dma.hbm_to_vmem [thread:$0]  %s27, 128, %s29, [#allocation6]
    $region9: #{tpu_custom_call.1} parent=1 // pred_fallthru
      _
    // Predicated region
    $region10: #{tpu_custom_call.1} parent=1 // pred_check
      _
    $region11: #{tpu_custom_call.1} parent=1 // pred_check_branch
      %33 = sbr.rel (0) target = $region13
    $region12: #{tpu_custom_call.1} parent=1 // pred_region
      %35 = dma.done [#allocation3], 128
    $region13: #{tpu_custom_call.1} parent=1 // pred_fallthru
      _
    // Predicated region
    $region14: #{tpu_custom_call.1} parent=1 // pred_check
      _
    $region15: #{tpu_custom_call.1} parent=1 // pred_check_branch
      %37 = sbr.rel (0) target = $region17
    $region16: #{tpu_custom_call.1} parent=1 // pred_region
      %39 = dma.done [#allocation6], 128
    $region17: #{tpu_custom_call.1} parent=1 // pred_fallthru
      _
    %v40 = vld [vmem:[#allocation2] sm:$0xff]
    %v41 = vld [vmem:[#allocation5] sm:$0xff]
    %vm42 = vcmask 130048
    %v43 = vsel %vm42, %v40, -inf
    %44 = vmax.xlane.f32.xlu0 %v43
    %v45 = vpop.xlane.xlu0 %44
    %v46 = vsub.f32 %v40, %v45
    %v47 = vmul.f32 %v46, 1.442695
    %v48 = vpow.pop %v47
    %v49 = vsel %vm42, %v48, 0.0
    %50 = vadd.xlane.f32.xlu0 %v49
    %v51 = vpop.xlane.xlu0 %50
    %v52 = vmul.f32 %v41, %v48
    %v53 = vsel %vm42, %v52, 0.0
    %54 = vadd.xlane.f32.xlu0 %v53
    %v55 = vpop.xlane.xlu0 %54
    %s56 = smul.u32 0, 8
    %v57 = vlaneseq
    %v58 = vshrl.u32 %v57, 7
    %v59 = vstv %s56
    %v60 = vadd.s32 %v59, %v58
    %v61 = vrcp.pop %v51
    %v62 = vmul.f32 %v51, %v61
    %v63 = vsub.f32 1.0, %v62
    %v64 = vmul.f32 %v61, %v63
    %v65 = vadd.f32 %v61, %v64
    %vm66 = vweird.f32 %v51
    %vm67 = vweird.f32 %v61
    %vm68 = vmor %vm66, %vm67
    %v69 = vsel %vm68, %v61, %v65
    %v70 = vand.u32 2147483647, %v51
    %vm71 = vcmp.eq.f32.partialorder %v70, 8.507059e+37
    %v72 = vand.u32 %v51, 2147483648
    %v73 = vor.u32 1.1754944e-38, %v72
    %v74 = vsel %vm71, %v73, %v69
    %v75 = vmul.f32 %v55, %v74
    %v76 = vmax.f32 %v75, 0.0001
    %v77 = vpow.f32 %v76, 0.7
    %v78 = vsub.f32 1.0, %v77
    %v79 = vrcp.pop 0.7
    %v80 = vmul.f32 0.7, %v79
    %v81 = vsub.f32 1.0, %v80
    %v82 = vmul.f32 %v79, %v81
    %v83 = vadd.f32 %v79, %v82
    %vm84 = vweird.f32 %v79
    %v85 = vsel %vm84, %v79, %v83
    %v86 = vmul.f32 %v78, %v85
    %vm87 = vcmp.lt.s32.totalorder %v60, 8
    %v88 = vsel %vm87, %v86, 0.0
    %vm89 = vcmask 7168
    %v90 = vsel %vm89, %v88, 0.0
    %91 = vadd.xlane.f32.xlu0 %v90
    %v92 = vpop.xlane.xlu0 %91
    %v93 = vrot.slane %v92, 4
    %v94 = vadd.f32 %v92, %v93
    %v95 = vrot.slane %v94, 2
    %v96 = vadd.f32 %v94, %v95
    %v97 = vrot.slane %v96, 1
    %v98 = vadd.f32 %v96, %v97
    %s99 = vtos %v98
    %v100 = vstv %s99
    %101 = vst [vmem:[#allocation7] sm:$0xff] %v100
    // Predicated region
    $region18: #{tpu_custom_call.1} parent=1 // pred_check
      _
    $region19: #{tpu_custom_call.1} parent=1 // pred_check_branch
      %103 = sbr.rel (0) target = $region21
    $region20: #{tpu_custom_call.1} parent=1 // pred_region
      %105 = vsyncadd [#allocation4], 0
      %s107 = sshll.u32 [#allocation7], 4
      %s108 = int_to_ptr.vmem [resolvable:$true] %s107
      %s109 = sshll.u32 %s2, 4
      %s110 = int_to_ptr.hbm [resolvable:$true] %s109
      %112 = dma.vmem_to_hbm [thread:$0]  %s108, 128, %s110, [#allocation4]
    $region21: #{tpu_custom_call.1} parent=1 // pred_fallthru
      _
    // Predicated region
    $region22: #{tpu_custom_call.1} parent=1 // pred_check
      _
    $region23: #{tpu_custom_call.1} parent=1 // pred_check_branch
      %114 = sbr.rel (0) target = $region25
    $region24: #{tpu_custom_call.1} parent=1 // pred_region
      %116 = dma.done [#allocation4], 128
    $region25: #{tpu_custom_call.1} parent=1 // pred_fallthru
      _
    %117 = vsyncpa [#allocation3], 1
    %118 = vsyncpa [#allocation6], 1
    %119 = vsyncpa [#allocation4], 1

</llo_original>
